<compile_context>
chip_gen: v6e
topology: v6e:2x2x1
jax: 0.10.0
libtpu: 0.0.40
codegen_flags: <defaults>
</compile_context>

<pallas_src>
import functools

import jax
import jax.numpy as jnp
from jax import lax
from jax.experimental import pallas as pl
from jax.experimental.pallas import tpu as pltpu


# ----------------------------- kernel helpers -------------------------------

def _tile_logits_col(x_ref, mask_ref, w1_ref, b1_ref, wc_ref, bc_ref):
    """Per-sequence scalar logit for one batch tile; returns a (tb, 1) column."""
    tb, s = mask_ref.shape
    h = w1_ref.shape[1]
    # Token-wise dense layer on the MXU: bf16 operands, f32 accumulation.
    hf = jnp.dot(x_ref[...], w1_ref[...], preferred_element_type=jnp.float32)
    hf = jnp.tanh(hf + b1_ref[...])                                  # (tb*s, h) f32 epilogue
    h3 = hf.reshape(tb, s, h)                                        # leading-dim split only
    # Masked mean pooling over the sequence (guarded against all-zero masks).
    m = mask_ref[...]
    denom = jnp.maximum(jnp.sum(m, axis=-1, keepdims=True), 1.0)     # (tb, 1)
    pooled = jnp.sum(h3 * (m / denom)[:, :, None], axis=1)           # (tb, h)
    # num_labels = 1 classifier as a lane reduction (no (H, 1) MXU matmul).
    return jnp.sum(pooled * wc_ref[...], axis=-1, keepdims=True) + bc_ref[0, 0]


def _lane_row(col):
    """(tb, 1) sublane column -> (1, tb) lane-dense row via iota mask + sublane reduce."""
    tb = col.shape[0]
    ri = lax.broadcasted_iota(jnp.int32, (tb, tb), 0)
    ci = lax.broadcasted_iota(jnp.int32, (tb, tb), 1)
    return jnp.sum(jnp.where(ri == ci, col, 0.0), axis=0, keepdims=True)


# ------------------------------- kernels -------------------------------------

def _eval_kernel(x_ref, mask_ref, w1_ref, b1_ref, wc_ref, bc_ref, logits_ref):
    logits_ref[...] = _lane_row(
        _tile_logits_col(x_ref, mask_ref, w1_ref, b1_ref, wc_ref, bc_ref))


def _train_kernel(x_ref, mask_ref, w1_ref, b1_ref, wc_ref, bc_ref,
                  logits_ref, loss_ref, *, sample_num, inv_num_groups):
    col = _tile_logits_col(x_ref, mask_ref, w1_ref, b1_ref, wc_ref, bc_ref)  # (tb, 1)
    logits_ref[...] = _lane_row(col)

    # Fused listwise CE.  torch target = zeros  =>  the positive document is
    # column 0 of every consecutive `sample_num` group of logits.
    tb = col.shape[0]
    gpt = tb // sample_num                                    # groups in this tile
    ri = lax.broadcasted_iota(jnp.int32, (tb, gpt), 0)
    gi = lax.broadcasted_iota(jnp.int32, (tb, gpt), 1)
    member = (ri // sample_num) == gi                         # (tb, gpt)
    masked = jnp.where(member, col, -1e30)
    gmax = jnp.max(masked, axis=0, keepdims=True)             # (1, gpt)
    gexp = jnp.where(member, jnp.exp(col - gmax), 0.0)        # (tb, gpt)
    glse = gmax + jnp.log(jnp.sum(gexp, axis=0, keepdims=True))   # (1, gpt)
    rvec = lax.broadcasted_iota(jnp.int32, (tb, 1), 0)
    pos = jnp.where(rvec % sample_num == 0, col, 0.0)         # positive scores
    tile_loss = (jnp.sum(glse, axis=-1, keepdims=True)
                 - jnp.sum(pos, axis=0, keepdims=True))       # (1, 1)

    @pl.when(pl.program_id(0) == 0)
    def _():
        loss_ref[...] = jnp.zeros_like(loss_ref)
    loss_ref[...] += tile_loss * inv_num_groups


# ------------------------------ wrappers --------------------------------------

def _specs(S, H, tb):
    in_specs = [
        pl.BlockSpec((tb * S, H), lambda i: (i, 0)),        # x (flattened), pipelined over batch
        pl.BlockSpec((tb, S), lambda i: (i, 0)),            # attention mask tile
        pl.BlockSpec((H, H), lambda i: (0, 0)),             # w1: VMEM-resident across tiles
        pl.BlockSpec((1, H), lambda i: (0, 0)),             # b1
        pl.BlockSpec((1, H), lambda i: (0, 0)),             # w_cls (lane-dense row)
        pl.BlockSpec(memory_space=pltpu.MemorySpace.SMEM),  # b_cls scalar
    ]
    logits_spec = pl.BlockSpec((1, tb), lambda i: (0, i))   # lane-dense logits row
    return in_specs, logits_spec


def _prep_inputs(params, tokens, mask):
    emb, w1, b1, wc, bc = params
    x = emb[tokens]                                   # embedding gather (XLA glue)
    B, S, H = x.shape
    x = x.astype(jnp.bfloat16).reshape(B * S, H)      # bf16 MXU operand, pre-flattened
    return x, mask.astype(jnp.float32), w1.astype(jnp.bfloat16), b1, wc, bc, (B, S, H)


def reranker_forward(params, batch, sample_num, training, tb=None):
    """Mirrors Reranker.forward: eval -> (B, 1) logits, training -> scalar CE loss."""
    x, mask, w1, b1, wc, bc, (B, S, H) = _prep_inputs(
        params, batch["input_ids"], batch["attention_mask"])
    tb = B if tb is None else tb                      # for B > 128, use a multiple of 128
    assert B % tb == 0 and tb % 8 == 0
    grid = (B // tb,)
    in_specs, logits_spec = _specs(S, H, tb)
    common = dict(grid=grid, in_specs=in_specs)

    if not training:
        row = pl.pallas_call(
            _eval_kernel,
            out_shape=jax.ShapeDtypeStruct((1, B), jnp.float32),
            out_specs=logits_spec,
            compiler_params=pltpu.CompilerParams(
                dimension_semantics=("parallel",),    # independent batch tiles -> megacore
                vmem_limit_bytes=32 * 1024 * 1024),
            **common,
        )(x, mask, w1, b1, wc, bc)
        return row.reshape(B, 1)                      # torch logits shape (B, 1)

    assert tb % sample_num == 0, "batch tile must hold whole listwise groups"
    num_groups = B // sample_num
    kernel = functools.partial(_train_kernel, sample_num=sample_num,
                               inv_num_groups=1.0 / num_groups)
    _, loss = pl.pallas_call(
        kernel,
        out_shape=(jax.ShapeDtypeStruct((1, B), jnp.float32),
                   jax.ShapeDtypeStruct((1, 1), jnp.float32)),
        out_specs=(logits_spec, pl.BlockSpec((1, 1), lambda i: (0, 0))),
        compiler_params=pltpu.CompilerParams(
            dimension_semantics=("arbitrary",),       # loss accumulates across batch tiles
            vmem_limit_bytes=32 * 1024 * 1024),
        **common,
    )(x, mask, w1, b1, wc, bc)
    return loss[0, 0]


# --------------------------------- main ---------------------------------------

if __name__ == "__main__":
    key = jax.random.PRNGKey(0)
    k_emb, k_w1, k_b1, k_wc, k_tok = jax.random.split(key, 5)

    VOCAB, H, S = 128, 128, 8                 # H lane-aligned (128)
    sample_num, groups = 4, 2
    B = groups * sample_num                   # 8 sequences

    emb = jax.random.normal(k_emb, (VOCAB, H), jnp.float32) * 0.1
    w1 = jax.random.normal(k_w1, (H, H), jnp.float32) * 0.05
    b1 = jax.random.normal(k_b1, (1, H), jnp.float32) * 0.01
    wc = jax.random.normal(k_wc, (1, H), jnp.float32) * 0.1
    bc = jnp.zeros((1, 1), jnp.float32)
    params = (emb, w1, b1, wc, bc)

    tokens = jax.random.randint(k_tok, (B, S), 0, VOCAB, jnp.int32)
    mask = jnp.ones((B, S), jnp.float32)
    mask = mask.at[1, S - 2:].set(0.0)        # exercise masked mean + guard
    batch = {"input_ids": tokens, "attention_mask": mask}

    # inference path
    logits = reranker_forward(params, batch, sample_num, training=False)
    logits = jax.block_until_ready(logits)

    # training path (fused listwise CE)
    loss = reranker_forward(params, batch, sample_num, training=True)
    loss = jax.block_until_ready(loss)

    # reference check (plain JAX, same bf16 matmul operands / f32 accumulation)
    xb = emb[tokens].astype(jnp.bfloat16)
    w1b = w1.astype(jnp.bfloat16)
    h = jnp.tanh(
        jnp.dot(xb.reshape(B * S, H), w1b, preferred_element_type=jnp.float32) + b1
    ).reshape(B, S, H)
    denom = jnp.maximum(jnp.sum(mask, axis=1, keepdims=True), 1.0)
    pooled = jnp.sum(h * mask[:, :, None], axis=1) / denom
    ref_logits = jnp.sum(pooled * wc, axis=-1, keepdims=True) + bc[0, 0]
    ref_scores = ref_logits.reshape(-1, sample_num)
    ref_loss = jnp.mean(jax.nn.logsumexp(ref_scores, axis=-1) - ref_scores[:, 0])

    assert logits.shape == (B, 1)
    assert jnp.allclose(logits, ref_logits, atol=2e-4, rtol=2e-4), "logits mismatch"
    assert jnp.allclose(loss, ref_loss, atol=2e-4, rtol=2e-4), "loss mismatch"

    print("KERNEL_OK")
</pallas_src>

<mosaic_0001>
module attributes {stable_mosaic.version = 11 : i64} {
  func.func @_eval_kernel(%arg0: i32, %arg1: memref<64x128xbf16, #tpu.memory_space<vmem>>, %arg2: memref<8x8xf32, #tpu.memory_space<vmem>>, %arg3: memref<128x128xbf16, #tpu.memory_space<vmem>>, %arg4: memref<1x128xf32, #tpu.memory_space<vmem>>, %arg5: memref<1x128xf32, #tpu.memory_space<vmem>>, %arg6: memref<1x1xf32, #tpu.memory_space<smem>>, %arg7: memref<1x8xf32, #tpu.memory_space<vmem>>) attributes {dimension_semantics = [#tpu.dimension_semantics<parallel>], iteration_bounds = array<i64: 1>, scalar_prefetch = 0 : i64, scratch_operands = 0 : i64, tpu.core_type = #tpu.core_type<tc>, window_params = [{transform_indices = @transform_0, window_bounds = array<i64: 64, 128>}, {transform_indices = @transform_1, window_bounds = array<i64: 8, 8>}, {pipeline_mode = #tpu.pipeline_mode<synchronous>, transform_indices = @transform_2, window_bounds = array<i64: 128, 128>}, {pipeline_mode = #tpu.pipeline_mode<synchronous>, transform_indices = @transform_3, window_bounds = array<i64: 1, 128>}, {pipeline_mode = #tpu.pipeline_mode<synchronous>, transform_indices = @transform_4, window_bounds = array<i64: 1, 128>}, {transform_indices = @transform_5, window_bounds = array<i64: 1, 1>}, {transform_indices = @transform_6, window_bounds = array<i64: 1, 8>}]} {
    %c0 = arith.constant 0 : index
    %c0_0 = arith.constant 0 : index
    %0 = vector.load %arg1[%c0, %c0_0] : memref<64x128xbf16, #tpu.memory_space<vmem>>, vector<64x128xbf16>
    %c0_1 = arith.constant 0 : index
    %c0_2 = arith.constant 0 : index
    %1 = vector.load %arg3[%c0_1, %c0_2] : memref<128x128xbf16, #tpu.memory_space<vmem>>, vector<128x128xbf16>
    %cst = arith.constant dense<0.000000e+00> : vector<64x128xf32>
    %2 = tpu.matmul %0, %1, %cst {dimension_numbers = #tpu.dot_dimension_numbers<[1], [0], [0], [1], [0, 0, 1, 1], [], []>} : vector<64x128xbf16>, vector<128x128xbf16>, vector<64x128xf32> -> vector<64x128xf32>
    %c0_3 = arith.constant 0 : index
    %c0_4 = arith.constant 0 : index
    %3 = vector.load %arg4[%c0_3, %c0_4] : memref<1x128xf32, #tpu.memory_space<vmem>>, vector<1x128xf32>
    %4 = vector.broadcast %3 : vector<1x128xf32> to vector<64x128xf32>
    %5 = arith.addf %2, %4 : vector<64x128xf32>
    %6 = math.tanh %5 : vector<64x128xf32>
    %7 = vector.shape_cast %6 : vector<64x128xf32> to vector<8x8x128xf32>
    %c0_5 = arith.constant 0 : index
    %c0_6 = arith.constant 0 : index
    %8 = vector.load %arg2[%c0_5, %c0_6] : memref<8x8xf32, #tpu.memory_space<vmem>>, vector<8x8xf32>
    %cst_7 = arith.constant dense<0.000000e+00> : vector<8xf32>
    %9 = vector.multi_reduction <add>, %8, %cst_7 [1] : vector<8x8xf32> to vector<8xf32>
    %10 = vector.shape_cast %9 : vector<8xf32> to vector<8x1xf32>
    %cst_8 = arith.constant 1.000000e+00 : f32
    %11 = vector.broadcast %cst_8 : f32 to vector<8x1xf32>
    %12 = arith.maximumf %10, %11 : vector<8x1xf32>
    %13 = vector.broadcast %12 : vector<8x1xf32> to vector<8x8xf32>
    %14 = arith.divf %8, %13 : vector<8x8xf32>
    %15 = vector.shape_cast %14 : vector<8x8xf32> to vector<8x8x1xf32>
    %16 = vector.broadcast %15 : vector<8x8x1xf32> to vector<8x8x128xf32>
    %17 = arith.mulf %7, %16 : vector<8x8x128xf32>
    %cst_9 = arith.constant dense<0.000000e+00> : vector<8x128xf32>
    %18 = vector.multi_reduction <add>, %17, %cst_9 [1] : vector<8x8x128xf32> to vector<8x128xf32>
    %c0_10 = arith.constant 0 : index
    %c0_11 = arith.constant 0 : index
    %19 = vector.load %arg5[%c0_10, %c0_11] : memref<1x128xf32, #tpu.memory_space<vmem>>, vector<1x128xf32>
    %20 = vector.broadcast %19 : vector<1x128xf32> to vector<8x128xf32>
    %21 = arith.mulf %18, %20 : vector<8x128xf32>
    %cst_12 = arith.constant dense<0.000000e+00> : vector<8xf32>
    %22 = vector.multi_reduction <add>, %21, %cst_12 [1] : vector<8x128xf32> to vector<8xf32>
    %23 = vector.shape_cast %22 : vector<8xf32> to vector<8x1xf32>
    %c0_13 = arith.constant 0 : index
    %c0_14 = arith.constant 0 : index
    %24 = memref.load %arg6[%c0_13, %c0_14] : memref<1x1xf32, #tpu.memory_space<smem>>
    %25 = vector.broadcast %24 : f32 to vector<8x1xf32>
    %26 = arith.addf %23, %25 : vector<8x1xf32>
    %27 = tpu.iota {dimensions = array<i32: 0>} : vector<8x8xi32>
    %28 = tpu.iota {dimensions = array<i32: 1>} : vector<8x8xi32>
    %29 = arith.cmpi eq, %27, %28 : vector<8x8xi32>
    %cst_15 = arith.constant 0.000000e+00 : f32
    %30 = vector.shape_cast %26 : vector<8x1xf32> to vector<8x1xf32>
    %31 = vector.broadcast %30 : vector<8x1xf32> to vector<8x8xf32>
    %32 = vector.broadcast %cst_15 : f32 to vector<8x8xf32>
    %33 = arith.select %29, %31, %32 : vector<8x8xi1>, vector<8x8xf32>
    %cst_16 = arith.constant dense<0.000000e+00> : vector<8xf32>
    %34 = vector.multi_reduction <add>, %33, %cst_16 [0] : vector<8x8xf32> to vector<8xf32>
    %35 = vector.shape_cast %34 : vector<8xf32> to vector<1x8xf32>
    %c0_17 = arith.constant 0 : index
    %c0_18 = arith.constant 0 : index
    %36 = vector.load %arg7[%c0_17, %c0_18] : memref<1x8xf32, #tpu.memory_space<vmem>>, vector<1x8xf32>
    tpu.vector_store %arg7[%c0_17, %c0_18], %35 {strides = array<i32>} : memref<1x8xf32, #tpu.memory_space<vmem>>, vector<1x8xf32>,
    return
  }
  func.func @transform_0(%arg0: i32) -> (i32, i32) {
    %c0_i32 = arith.constant 0 : i32
    %c0_i32_0 = arith.constant 0 : i32
    return %arg0, %c0_i32 : i32, i32
  }
  func.func @transform_1(%arg0: i32) -> (i32, i32) {
    %c0_i32 = arith.constant 0 : i32
    %c0_i32_0 = arith.constant 0 : i32
    return %arg0, %c0_i32 : i32, i32
  }
  func.func @transform_2(%arg0: i32) -> (i32, i32) {
    %c0_i32 = arith.constant 0 : i32
    %c0_i32_0 = arith.constant 0 : i32
    %c0_i32_1 = arith.constant 0 : i32
    return %c0_i32, %c0_i32_0 : i32, i32
  }
  func.func @transform_3(%arg0: i32) -> (i32, i32) {
    %c0_i32 = arith.constant 0 : i32
    %c0_i32_0 = arith.constant 0 : i32
    %c0_i32_1 = arith.constant 0 : i32
    return %c0_i32, %c0_i32_0 : i32, i32
  }
  func.func @transform_4(%arg0: i32) -> (i32, i32) {
    %c0_i32 = arith.constant 0 : i32
    %c0_i32_0 = arith.constant 0 : i32
    %c0_i32_1 = arith.constant 0 : i32
    return %c0_i32, %c0_i32_0 : i32, i32
  }
  func.func @transform_5(%arg0: i32) -> (i32, i32) {
    %c0_i32 = arith.constant 0 : i32
    %c0_i32_0 = arith.constant 0 : i32
    %c0_i32_1 = arith.constant 0 : i32
    return %c0_i32, %c0_i32_0 : i32, i32
  }
  func.func @transform_6(%arg0: i32) -> (i32, i32) {
    %c0_i32 = arith.constant 0 : i32
    %c0_i32_0 = arith.constant 0 : i32
    return %c0_i32, %arg0 : i32, i32
  }
}

</mosaic_0001>

<llo_original>
// kernel: tpu_custom_call.1
$region0: #{tpu_custom_call.1}
  #allocation0 [shape = 'u32[]', space=smem, size = 0x4, offset = 0x4, fixed_abs, tag = 'smem constant byte address 0x4 - core index']
  #allocation1 [shape = 'u32[144,128]{1,0:T(1,128)}', space=vmem, size = 0x12000, scoped, tag = 'internal scratch']
  #allocation2 [shape = 'f32[1,1]{1,0:T(1,128)S(6)}', space=smem, size = 0x200, scoped, tag = 'scoped memory for tpu_custom_call.1']
  %s0 = inlined_call_operand.hbm [shape: bf16[64,128], index: 0, kind: input, shape index: {}]
  %s1 = inlined_call_operand.hbm [shape: f32[8,8], index: 1, kind: input, shape index: {}]
  %s2 = inlined_call_operand.hbm [shape: bf16[128,128], index: 2, kind: input, shape index: {}]
  %s3 = inlined_call_operand.vmem [shape: f32[1,128], index: 3, kind: input, shape index: {}]
  %s4 = inlined_call_operand.vmem [shape: f32[1,128], index: 4, kind: input, shape index: {}]
  %s5 = inlined_call_operand.<no memory space> [shape: f32[1,1], index: 5, kind: input, shape index: {}]
  %s6 = inlined_call_operand.hbm [shape: f32[1,8], index: 6, kind: output, shape index: {}]
  %s7 = sld [smem:[#allocation0]]
  $region46: #{tpu_custom_call.1} parent=0
    _
  %s9 = ssub.s32 1, %s7
  %s10 = scalar_select 0, %s9, %s7
  %11 = sst [smem:[#allocation2]] %s5
  $region1: #{tpu_custom_call.1} parent=0
    #allocation3 [shape = 'u8[16384]{0}', space=vmem, size = 0x4000, scoped, tag = 'input window, operand 0, single buffered']
    #allocation4 [shape = 's32[1]{0}', space=sflag, size = 0x4, scoped, tag = 'scoped memory for tpu_custom_call.1']
    #allocation5 [shape = 's32[1]{0}', space=sflag, size = 0x4, scoped, tag = 'scoped memory for tpu_custom_call.1']
    #allocation6 [shape = 'u8[4096]{0}', space=vmem, size = 0x1000, scoped, tag = 'input window, operand 1, single buffered']
    #allocation7 [shape = 's32[1]{0}', space=sflag, size = 0x4, scoped, tag = 'scoped memory for tpu_custom_call.1']
    #allocation8 [shape = 'u8[32768]{0}', space=vmem, size = 0x8000, scoped, tag = 'input window, operand 2, single buffered']
    #allocation9 [shape = 'u8[512]{0}', space=vmem, size = 0x400, scoped, tag = 'output window, operand 0, single buffered']
    %12 = vsyncpa [#allocation4], 0
    %13 = vsyncpa [#allocation7], 0
    %14 = vsyncpa [#allocation5], 0
    // Predicated region
    $region2: #{tpu_custom_call.1} parent=1 // pred_check
      _
    $region3: #{tpu_custom_call.1} parent=1 // pred_check_branch
      %16 = sbr.rel (0) target = $region5
    $region4: #{tpu_custom_call.1} parent=1 // pred_region
      %s18 = ssub.s32 512, 512
      %19 = vsyncadd [#allocation4], %s18
      %s20 = sshll.u32 [#allocation3], 4
      %s21 = int_to_ptr.vmem [resolvable:$true] %s20
      %26 = dma.hbm_to_vmem [thread:$0]  %s0, 512, %s21, [#allocation4], 64, 64, 4
    $region5: #{tpu_custom_call.1} parent=1 // pred_fallthru
      _
    // Predicated region
    $region6: #{tpu_custom_call.1} parent=1 // pred_check
      _
    $region7: #{tpu_custom_call.1} parent=1 // pred_check_branch
      %28 = sbr.rel (0) target = $region9
    $region8: #{tpu_custom_call.1} parent=1 // pred_region
      %s30 = ssub.s32 128, 128
      %31 = vsyncadd [#allocation7], %s30
      %s33 = sshll.u32 [#allocation6], 4
      %s34 = int_to_ptr.vmem [resolvable:$true] %s33
      %36 = dma.hbm_to_vmem [thread:$0]  %s1, 128, %s34, [#allocation7]
    $region9: #{tpu_custom_call.1} parent=1 // pred_fallthru
      _
    // Predicated region
    $region10: #{tpu_custom_call.1} parent=1 // pred_check
      _
    $region11: #{tpu_custom_call.1} parent=1 // pred_check_branch
      %38 = sbr.rel (0) target = $region13
    $region12: #{tpu_custom_call.1} parent=1 // pred_region
      %s40 = ssub.s32 1024, 1024
      %41 = vsyncadd [#allocation7], %s40
      %s42 = sshll.u32 [#allocation8], 4
      %s43 = int_to_ptr.vmem [resolvable:$true] %s42
      %48 = dma.hbm_to_vmem [thread:$0]  %s2, 1024, %s43, [#allocation7], 64, 64, 4
    $region13: #{tpu_custom_call.1} parent=1 // pred_fallthru
      _
    // Predicated region
    $region14: #{tpu_custom_call.1} parent=1 // pred_check
      _
    $region15: #{tpu_custom_call.1} parent=1 // pred_check_branch
      %50 = sbr.rel (0) target = $region17
    $region16: #{tpu_custom_call.1} parent=1 // pred_region
      _
    $region17: #{tpu_custom_call.1} parent=1 // pred_fallthru
      _
    // Predicated region
    $region18: #{tpu_custom_call.1} parent=1 // pred_check
      _
    $region19: #{tpu_custom_call.1} parent=1 // pred_check_branch
      %52 = sbr.rel (0) target = $region21
    $region20: #{tpu_custom_call.1} parent=1 // pred_region
      _
    $region21: #{tpu_custom_call.1} parent=1 // pred_fallthru
      _
    // Predicated region
    $region22: #{tpu_custom_call.1} parent=1 // pred_check
      _
    $region23: #{tpu_custom_call.1} parent=1 // pred_check_branch
      %54 = sbr.rel (0) target = $region25
    $region24: #{tpu_custom_call.1} parent=1 // pred_region
      _
    $region25: #{tpu_custom_call.1} parent=1 // pred_fallthru
      _
    // Predicated region
    $region26: #{tpu_custom_call.1} parent=1 // pred_check
      _
    $region27: #{tpu_custom_call.1} parent=1 // pred_check_branch
      %56 = sbr.rel (0) target = $region29
    $region28: #{tpu_custom_call.1} parent=1 // pred_region
      %57 = dma.done [#allocation4], 512
    $region29: #{tpu_custom_call.1} parent=1 // pred_fallthru
      _
    // Predicated region
    $region30: #{tpu_custom_call.1} parent=1 // pred_check
      _
    $region31: #{tpu_custom_call.1} parent=1 // pred_check_branch
      %59 = sbr.rel (0) target = $region33
    $region32: #{tpu_custom_call.1} parent=1 // pred_region
      %60 = dma.done [#allocation7], 128
    $region33: #{tpu_custom_call.1} parent=1 // pred_fallthru
      _
    // Predicated region
    $region34: #{tpu_custom_call.1} parent=1 // pred_check
      _
    $region35: #{tpu_custom_call.1} parent=1 // pred_check_branch
      %62 = sbr.rel (0) target = $region37
    $region36: #{tpu_custom_call.1} parent=1 // pred_region
      %63 = dma.done [#allocation7], 1024
    $region37: #{tpu_custom_call.1} parent=1 // pred_fallthru
      _
    %v65 = vld [vmem:[#allocation3] sm:$0xf]
    %v66 = vld [vmem:[#allocation3 + $0x4] sm:$0xf]
    %v67 = vld [vmem:[#allocation3 + $0x8] sm:$0xf]
    %v68 = vld [vmem:[#allocation3 + $0xc] sm:$0xf]
    %v69 = vld [vmem:[#allocation3 + $0x10] sm:$0xf]
    %v70 = vld [vmem:[#allocation3 + $0x14] sm:$0xf]
    %v71 = vld [vmem:[#allocation3 + $0x18] sm:$0xf]
    %v72 = vld [vmem:[#allocation3 + $0x1c] sm:$0xf]
    %v73 = vld [vmem:[#allocation8] sm:$0xf]
    %v74 = vld [vmem:[#allocation8 + $0x4] sm:$0xf]
    %v75 = vld [vmem:[#allocation8 + $0x8] sm:$0xf]
    %v76 = vld [vmem:[#allocation8 + $0xc] sm:$0xf]
    %v77 = vld [vmem:[#allocation8 + $0x10] sm:$0xf]
    %v78 = vld [vmem:[#allocation8 + $0x14] sm:$0xf]
    %v79 = vld [vmem:[#allocation8 + $0x18] sm:$0xf]
    %v80 = vld [vmem:[#allocation8 + $0x1c] sm:$0xf]
    %v81 = vld [vmem:[#allocation8 + $0x20] sm:$0xf]
    %v82 = vld [vmem:[#allocation8 + $0x24] sm:$0xf]
    %v83 = vld [vmem:[#allocation8 + $0x28] sm:$0xf]
    %v84 = vld [vmem:[#allocation8 + $0x2c] sm:$0xf]
    %v85 = vld [vmem:[#allocation8 + $0x30] sm:$0xf]
    %v86 = vld [vmem:[#allocation8 + $0x34] sm:$0xf]
    %v87 = vld [vmem:[#allocation8 + $0x38] sm:$0xf]
    %v88 = vld [vmem:[#allocation8 + $0x3c] sm:$0xf]
    %v89 = vld [vmem:[%s3] sm:$0x1]
    %v91 = vlaneseq
    %v92 = vshrl.u32 %v91, 7
    %v93 = vsub.s32 0, %v92
    %v94 = vrot.slane %v89, %v93
    %v104 = vunpack.c.l.b16 %v65
    %v105 = vunpack.c.l.b16 %v66
    %v106 = vunpack.c.l.b16 %v67
    %v107 = vunpack.c.l.b16 %v68
    %v108 = vunpack.c.l.b16 %v69
    %v109 = vunpack.c.l.b16 %v70
    %v110 = vunpack.c.l.b16 %v71
    %v111 = vunpack.c.l.b16 %v72
    %v112 = vpack.c.b16 %v105, %v104
    %v113 = vpack.c.b16 %v107, %v106
    %v114 = vpack.c.b16 %v109, %v108
    %v115 = vpack.c.b16 %v111, %v110
    %v136 = vunpack.c.l.b16 %v73
    %v137 = vunpack.c.l.b16 %v74
    %v138 = vunpack.c.l.b16 %v75
    %v139 = vunpack.c.l.b16 %v76
    %v140 = vunpack.c.l.b16 %v77
    %v141 = vunpack.c.l.b16 %v78
    %v142 = vunpack.c.l.b16 %v79
    %v143 = vunpack.c.l.b16 %v80
    %v144 = vunpack.c.l.b16 %v81
    %v145 = vunpack.c.l.b16 %v82
    %v146 = vunpack.c.l.b16 %v83
    %v147 = vunpack.c.l.b16 %v84
    %v148 = vunpack.c.l.b16 %v85
    %v149 = vunpack.c.l.b16 %v86
    %v150 = vunpack.c.l.b16 %v87
    %v151 = vunpack.c.l.b16 %v88
    %v152 = vpack.c.b16 %v137, %v136
    %v153 = vpack.c.b16 %v139, %v138
    %v154 = vpack.c.b16 %v141, %v140
    %v155 = vpack.c.b16 %v143, %v142
    %v156 = vpack.c.b16 %v145, %v144
    %v157 = vpack.c.b16 %v147, %v146
    %v158 = vpack.c.b16 %v149, %v148
    %v159 = vpack.c.b16 %v151, %v150
    %168 = vmatprep.subr.bf16.mxu0 0
    %169 = vmatpush1.bf16.msra.mxu0 %v159
    %170 = vmatprep.subr.bf16.mxu0 0
    %171 = vmatpush1.bf16.msra.mxu0 %v158
    %172 = vmatprep.subr.bf16.mxu0 0
    %173 = vmatpush1.bf16.msra.mxu0 %v157
    %174 = vmatprep.subr.bf16.mxu0 0
    %175 = vmatpush1.bf16.msra.mxu0 %v156
    %176 = vmatprep.subr.bf16.mxu0 0
    %177 = vmatpush1.bf16.msra.mxu0 %v155
    %178 = vmatprep.subr.bf16.mxu0 0
    %179 = vmatpush1.bf16.msra.mxu0 %v154
    %180 = vmatprep.subr.bf16.mxu0 0
    %181 = vmatpush1.bf16.msra.mxu0 %v153
    %182 = vmatprep.subr.bf16.mxu0 0
    %183 = vmatpush1.bf16.msra.mxu0 %v152
    %184 = vmatprep.subr.bf16.mxu0 0
    %185 = vmatpush2.bf16.msra.mxu0 0
    %186 = vmatprep.subr.bf16.mxu0 0
    %187 = vmatpush2.bf16.msra.mxu0 0
    %188 = vmatprep.subr.bf16.mxu0 0
    %189 = vmatpush2.bf16.msra.mxu0 0
    %190 = vmatprep.subr.bf16.mxu0 0
    %191 = vmatpush2.bf16.msra.mxu0 0
    %192 = vmatprep.subr.bf16.mxu0 0
    %193 = vmatpush2.bf16.msra.mxu0 0
    %194 = vmatprep.subr.bf16.mxu0 0
    %195 = vmatpush2.bf16.msra.mxu0 0
    %196 = vmatprep.subr.bf16.mxu0 0
    %197 = vmatpush2.bf16.msra.mxu0 0
    %198 = vmatprep.subr.bf16.mxu0 0
    %199 = vmatpush2.bf16.msra.mxu0 0
    %200 = vmatprep.mubr.bf16.mxu0 0
    %201 = vmatmul.mubr.bf16.gmra.mxu0 %v112
    %v202 = vpop.f32.mrf.mxu0
    %v203 = vadd.f32 %v94, %v202
    %v204 = vpop.f32.mrf.mxu0
    %v205 = vpop.f32.mrf.mxu0
    %v206 = vadd.f32 %v94, %v205
    %v207 = vpop.f32.mrf.mxu0
    %208 = vmatprep.mubr.bf16.mxu0 0
    %209 = vmatmul.mubr.bf16.gmra.mxu0 %v113
    %v210 = vpop.f32.mrf.mxu0
    %v211 = vadd.f32 %v94, %v210
    %v212 = vpop.f32.mrf.mxu0
    %v213 = vpop.f32.mrf.mxu0
    %v214 = vadd.f32 %v94, %v213
    %v215 = vpop.f32.mrf.mxu0
    %216 = vmatprep.mubr.bf16.mxu0 0
    %217 = vmatmul.mubr.bf16.gmra.mxu0 %v114
    %v218 = vpop.f32.mrf.mxu0
    %v219 = vadd.f32 %v94, %v218
    %v220 = vpop.f32.mrf.mxu0
    %v221 = vpop.f32.mrf.mxu0
    %v222 = vadd.f32 %v94, %v221
    %v223 = vpop.f32.mrf.mxu0
    %224 = vmatprep.mubr.bf16.mxu0 0
    %225 = vmatmul.mubr.bf16.gmra.mxu0 %v115
    %v226 = vpop.f32.mrf.mxu0
    %v227 = vadd.f32 %v94, %v226
    %v228 = vpop.f32.mrf.mxu0
    %v229 = vpop.f32.mrf.mxu0
    %v230 = vadd.f32 %v94, %v229
    %v231 = vpop.f32.mrf.mxu0
    %232 = vdwg.mxu0
    %v233 = vtanh.pop %v203
    %v234 = vtanh.pop %v206
    %v235 = vtanh.pop %v211
    %v236 = vtanh.pop %v214
    %v237 = vtanh.pop %v219
    %v238 = vtanh.pop %v222
    %v239 = vtanh.pop %v227
    %v240 = vtanh.pop %v230
    %v241 = vld [vmem:[#allocation6] sm:$0xff]
    %vm242 = vcmask 64512
    %v243 = vsel %vm242, %v241, 0.0
    %244 = vadd.xlane.f32.xlu0 %v243
    %v245 = vpop.xlane.xlu0 %244
    %v246 = vmax.f32 %v245, 1.0
    %v247 = vrcp.pop %v246
    %v248 = vmul.f32 %v241, %v247
    %v249 = vlaneseq
    %v250 = vshrl.u32 %v249, 7
    %v251 = vsub.s32 0, %v250
    %v252 = vrot.slane %v248, %v251
    %254 = vbcast.lane.b32.xlu0 %v252, 256
    %v255 = vpop.permute.xlu0 %254
    %v256 = vlaneseq
    %v257 = vshrl.u32 %v256, 7
    %v258 = vsub.s32 1, %v257
    %v259 = vrot.slane %v248, %v258
    %261 = vbcast.lane.b32.xlu0 %v259, 256
    %v262 = vpop.permute.xlu0 %261
    %v263 = vlaneseq
    %v264 = vshrl.u32 %v263, 7
    %v265 = vsub.s32 2, %v264
    %v266 = vrot.slane %v248, %v265
    %268 = vbcast.lane.b32.xlu0 %v266, 256
    %v269 = vpop.permute.xlu0 %268
    %v270 = vlaneseq
    %v271 = vshrl.u32 %v270, 7
    %v272 = vsub.s32 3, %v271
    %v273 = vrot.slane %v248, %v272
    %275 = vbcast.lane.b32.xlu0 %v273, 256
    %v276 = vpop.permute.xlu0 %275
    %v277 = vlaneseq
    %v278 = vshrl.u32 %v277, 7
    %v279 = vsub.s32 4, %v278
    %v280 = vrot.slane %v248, %v279
    %282 = vbcast.lane.b32.xlu0 %v280, 256
    %v283 = vpop.permute.xlu0 %282
    %v284 = vlaneseq
    %v285 = vshrl.u32 %v284, 7
    %v286 = vsub.s32 5, %v285
    %v287 = vrot.slane %v248, %v286
    %289 = vbcast.lane.b32.xlu0 %v287, 256
    %v290 = vpop.permute.xlu0 %289
    %v291 = vlaneseq
    %v292 = vshrl.u32 %v291, 7
    %v293 = vsub.s32 6, %v292
    %v294 = vrot.slane %v248, %v293
    %296 = vbcast.lane.b32.xlu0 %v294, 256
    %v297 = vpop.permute.xlu0 %296
    %v298 = vlaneseq
    %v299 = vshrl.u32 %v298, 7
    %v300 = vsub.s32 7, %v299
    %v301 = vrot.slane %v248, %v300
    %303 = vbcast.lane.b32.xlu0 %v301, 256
    %v304 = vpop.permute.xlu0 %303
    %v305 = vmul.f32 %v233, %v255
    %v306 = vmul.f32 %v234, %v262
    %v307 = vmul.f32 %v235, %v269
    %v308 = vmul.f32 %v236, %v276
    %v309 = vmul.f32 %v237, %v283
    %v310 = vmul.f32 %v238, %v290
    %v311 = vmul.f32 %v239, %v297
    %v312 = vmul.f32 %v240, %v304
    %v313 = vrot.slane %v305, 4
    %v314 = vadd.f32 %v305, %v313
    %v315 = vrot.slane %v314, 2
    %v316 = vadd.f32 %v314, %v315
    %v317 = vrot.slane %v316, 1
    %v318 = vadd.f32 %v316, %v317
    %v319 = vrot.slane %v306, 4
    %v320 = vadd.f32 %v306, %v319
    %v321 = vrot.slane %v320, 2
    %v322 = vadd.f32 %v320, %v321
    %v323 = vrot.slane %v322, 1
    %v324 = vadd.f32 %v322, %v323
    %v325 = vrot.slane %v307, 4
    %v326 = vadd.f32 %v307, %v325
    %v327 = vrot.slane %v326, 2
    %v328 = vadd.f32 %v326, %v327
    %v329 = vrot.slane %v328, 1
    %v330 = vadd.f32 %v328, %v329
    %v331 = vrot.slane %v308, 4
    %v332 = vadd.f32 %v308, %v331
    %v333 = vrot.slane %v332, 2
    %v334 = vadd.f32 %v332, %v333
    %v335 = vrot.slane %v334, 1
    %v336 = vadd.f32 %v334, %v335
    %v337 = vrot.slane %v309, 4
    %v338 = vadd.f32 %v309, %v337
    %v339 = vrot.slane %v338, 2
    %v340 = vadd.f32 %v338, %v339
    %v341 = vrot.slane %v340, 1
    %v342 = vadd.f32 %v340, %v341
    %v343 = vrot.slane %v310, 4
    %v344 = vadd.f32 %v310, %v343
    %v345 = vrot.slane %v344, 2
    %v346 = vadd.f32 %v344, %v345
    %v347 = vrot.slane %v346, 1
    %v348 = vadd.f32 %v346, %v347
    %v349 = vrot.slane %v311, 4
    %v350 = vadd.f32 %v311, %v349
    %v351 = vrot.slane %v350, 2
    %v352 = vadd.f32 %v350, %v351
    %v353 = vrot.slane %v352, 1
    %v354 = vadd.f32 %v352, %v353
    %v355 = vrot.slane %v312, 4
    %v356 = vadd.f32 %v312, %v355
    %v357 = vrot.slane %v356, 2
    %v358 = vadd.f32 %v356, %v357
    %v359 = vrot.slane %v358, 1
    %v360 = vadd.f32 %v358, %v359
    %v361 = vld [vmem:[%s4] sm:$0x1]
    %v363 = vlaneseq
    %v364 = vshrl.u32 %v363, 7
    %v365 = vsub.s32 0, %v364
    %v366 = vrot.slane %v361, %v365
    %v368 = vmul.f32 %v318, %v366
    %v369 = vmul.f32 %v324, %v366
    %v370 = vmul.f32 %v330, %v366
    %v371 = vmul.f32 %v336, %v366
    %v372 = vmul.f32 %v342, %v366
    %v373 = vmul.f32 %v348, %v366
    %v374 = vmul.f32 %v354, %v366
    %v375 = vmul.f32 %v360, %v366
    %v384 = vrot.slane %v369, 7
    %vm385 = vcmask 1041409
    %v386 = vsel %vm385, %v384, %v368
    %v387 = vrot.slane %v370, 6
    %vm388 = vcmask 1042434
    %v389 = vsel %vm388, %v387, %v386
    %v390 = vrot.slane %v371, 5
    %vm391 = vcmask 1043459
    %v392 = vsel %vm391, %v390, %v389
    %v393 = vrot.slane %v372, 4
    %vm394 = vcmask 1044484
    %v395 = vsel %vm394, %v393, %v392
    %v396 = vrot.slane %v373, 3
    %vm397 = vcmask 1045509
    %v398 = vsel %vm397, %v396, %v395
    %v399 = vrot.slane %v374, 2
    %vm400 = vcmask 1046534
    %v401 = vsel %vm400, %v399, %v398
    %v402 = vrot.slane %v375, 1
    %vm403 = vcmask 1047559
    %v404 = vsel %vm403, %v402, %v401
    %406 = vadd.xlane.f32.xlu0 %v404
    %v407 = vpop.xlane.xlu0 %406
    %s408 = sld [smem:[#allocation2]]
    %v409 = vstv %s408
    %v410 = vadd.f32 %v407, %v409
    %v411 = vlaneseq
    %v412 = vshrl.u32 %v411, 7
    %v413 = vlaneseq
    %v414 = vand.u32 %v413, 127
    %vm415 = vcmp.eq.s32.totalorder %v412, %v414
    %v416 = vsel %vm415, %v410, 0.0
    %v417 = vsel %vm242, %v416, 0.0
    %v418 = vrot.slane %v417, 4
    %v419 = vadd.f32 %v417, %v418
    %v420 = vrot.slane %v419, 2
    %v421 = vadd.f32 %v419, %v420
    %v422 = vrot.slane %v421, 1
    %v423 = vadd.f32 %v421, %v422
    %vm424 = vcmask 57344
    %425 = vst.msk [vmem:[#allocation9] sm:$0x1] %vm424, %v423
    // Predicated region
    $region38: #{tpu_custom_call.1} parent=1 // pred_check
      _
    $region39: #{tpu_custom_call.1} parent=1 // pred_check_branch
      %427 = sbr.rel (0) target = $region41
    $region40: #{tpu_custom_call.1} parent=1 // pred_region
      %s429 = ssub.s32 16, 16
      %430 = vsyncadd [#allocation5], %s429
      %s432 = sshll.u32 [#allocation9], 4
      %s433 = int_to_ptr.vmem [resolvable:$true] %s432
      %435 = dma.vmem_to_hbm [thread:$0]  %s433, 16, %s6, [#allocation5]
    $region41: #{tpu_custom_call.1} parent=1 // pred_fallthru
      _
    // Predicated region
    $region42: #{tpu_custom_call.1} parent=1 // pred_check
      _
    $region43: #{tpu_custom_call.1} parent=1 // pred_check_branch
      %437 = sbr.rel (0) target = $region45
    $region44: #{tpu_custom_call.1} parent=1 // pred_region
      %438 = dma.done [#allocation5], 16
    $region45: #{tpu_custom_call.1} parent=1 // pred_fallthru
      _
    %439 = vsyncpa [#allocation4], 1
    %440 = vsyncpa [#allocation7], 1
    %441 = vsyncpa [#allocation5], 1

</llo_original>
